<compile_context>
chip_gen: v7x
topology: tpu7x:2x2x1
jax: 0.10.0
libtpu: 0.0.40
codegen_flags: <defaults>
</compile_context>

<pallas_src>
from functools import lru_cache, partial

import numpy as np
import jax
import jax.numpy as jnp
from jax.experimental import pallas as pl
from jax.experimental.pallas import tpu as pltpu

# ----------------------------- config -------------------------------------
RESOLUTION = 7          # cfg.FAST_RCNN.ROI_XFORM_RESOLUTION
SAMPLING_RATIO = 2      # cfg.FAST_RCNN.ROI_XFORM_SAMPLING_RATIO
SPATIAL_SCALE = 1.0 / 16.0
DIM_IN = 64             # (2048-channel real model, scaled down)
PLANES = 32             # dim_bottleneck (scaled down)
EXPANSION = 4
DIM_OUT = PLANES * EXPANSION   # 128
NUM_BLOCKS = 3


# ------------------- one-time pltpu.roll direction self-check ---------------
@lru_cache(maxsize=None)
def _roll_is_np_semantics() -> bool:
    """pltpu.roll is documented to follow np.roll; verify once on the running
    backend so the 3x3 tap shifts can never silently flip direction."""
    def k(x_ref, o_ref):
        o_ref[...] = pltpu.roll(x_ref[...], 3, axis=0)
    x = jnp.broadcast_to(jnp.arange(8, dtype=jnp.float32)[:, None], (8, 128))
    y = pl.pallas_call(k, out_shape=jax.ShapeDtypeStruct((8, 128), jnp.float32))(x)
    return bool(jnp.array_equal(y, jnp.roll(x, 3, axis=0)))


# ---------------------- fused res5 head kernel (3 blocks) -------------------
def _res5_head_kernel(*refs, num_blocks, has_proj, tap_shifts, inv_hw):
    """x -> [block0 | block1 | block2] -> avgpool for one tile of ROIs.

    ref order: x, mask, {w1,b1,w2,b2,w3,b3[,wd,bd]} per block, pool_mat, out.
    Taps, im2col slab and inter-block activations all stay in VMEM/vregs.
    """
    it = iter(refs)
    x_ref = next(it)
    mask_ref = next(it)
    blocks = []
    for bi in range(num_blocks):
        w1 = next(it); b1 = next(it)
        w2 = next(it); b2 = next(it)
        w3 = next(it); b3 = next(it)
        wd = next(it) if has_proj[bi] else None
        bd = next(it) if has_proj[bi] else None
        blocks.append((w1, b1, w2, b2, w3, b3, wd, bd))
    pm_ref = next(it)
    out_ref = next(it)

    mask = mask_ref[...]                     # [M, 9P] {0,1} f32, hoisted once
    cur_bf = x_ref[...]                      # [M, Cin] bf16
    cur_f32 = None

    for (w1_r, b1_r, w2_r, b2_r, w3_r, b3_r, wd_r, bd_r) in blocks:
        # conv1 1x1 (BN scale folded into w) + bias + relu, f32 epilogue
        a1 = jnp.dot(cur_bf, w1_r[...], preferred_element_type=jnp.float32)
        a1 = jnp.maximum(a1 + b1_r[...], 0.0)                # [M, P] f32

        # conv2 3x3/s1/p1: 9 XLU row-rolls -> masked im2col [M, 9P]
        #   -> one MXU contraction against w2 stored as [9P, P].
        taps = [a1 if s == 0 else pltpu.roll(a1, s, axis=0) for s in tap_shifts]
        im2col = (jnp.concatenate(taps, axis=1) * mask).astype(jnp.bfloat16)
        a2 = jnp.dot(im2col, w2_r[...], preferred_element_type=jnp.float32)
        a2 = jnp.maximum(a2 + b2_r[...], 0.0)                # [M, P] f32

        # conv3 1x1 + bias
        out = jnp.dot(a2.astype(jnp.bfloat16), w3_r[...],
                      preferred_element_type=jnp.float32) + b3_r[...]

        # shortcut: 1x1 projection (first block) or f32 identity carry
        if wd_r is not None:
            res = jnp.dot(cur_bf, wd_r[...],
                          preferred_element_type=jnp.float32) + bd_r[...]
        else:
            res = cur_f32
        cur_f32 = jnp.maximum(out + res, 0.0)                # [M, 4P] f32
        cur_bf = cur_f32.astype(jnp.bfloat16)

    # fused AvgPool2d(res): {0,1} bf16 pooling matmul (MXU) + f32 1/HW scale
    pooled = jnp.dot(pm_ref[...], cur_bf, preferred_element_type=jnp.float32)
    out_ref[...] = (pooled * inv_hw).astype(out_ref.dtype)


# ------------------------- host-side constant builders ----------------------
def _conv3x3_row_masks(G, H, W, m_pad, planes):
    """[m_pad, 9*planes] {0,1} f32: zero wherever a tap would cross an ROI /
    image boundary (or touch the dead pad rows). Tap-major column order."""
    HW = H * W
    m_valid = G * HW
    loc = np.arange(m_pad) % HW
    h, w = loc // W, loc % W
    row_ok = np.arange(m_pad) < m_valid
    cols = []
    for dy in (-1, 0, 1):
        for dx in (-1, 0, 1):
            ok = row_ok.copy()
            if dy == -1:
                ok &= h > 0
            elif dy == 1:
                ok &= h < H - 1
            if dx == -1:
                ok &= w > 0
            elif dx == 1:
                ok &= w < W - 1
            cols.append(np.repeat(ok[:, None], planes, axis=1))
    return jnp.asarray(np.concatenate(cols, axis=1).astype(np.float32))


def _pool_matrix(G, HW, m_pad):
    """[G, m_pad] {0,1} bf16 ROI-pooling matrix (pad rows get weight 0)."""
    pm = np.zeros((G, m_pad), np.float32)
    rows = np.arange(G * HW)
    pm[rows // HW, rows] = 1.0
    return jnp.asarray(pm).astype(jnp.bfloat16)


def _tile_plan(num_rois, hw):
    """1 tile on single-TensorCore chips (v5e/v6e); 2 'parallel' tiles on
    dual-TC parts (v7x / megacore).  Rows padded to a multiple of 8."""
    try:
        kind = jax.devices()[0].device_kind.lower()
    except Exception:
        kind = ""
    single_tc = any(t in kind for t in
                    ("v5e", "v5 lite", "v5lite", "v6e", "v6 lite", "v6lite"))
    T = 1 if (single_tc or num_rois < 2) else 2
    G = -(-num_rois // T)                    # ROIs per tile
    m_pad = -(-(G * hw) // 8) * 8            # 8-aligned sublane (row) count
    return T, G, m_pad


# ---------------------------- pallas_call wrapper ----------------------------
def res5_head_fused(x_tiles, params, *, G, H, W):
    """x_tiles: [T, M, Cin] bf16 (M = 8-aligned G*H*W) -> [T, G, DIM_OUT] f32."""
    T, M, Cin = x_tiles.shape
    blocks = params['res5']
    P = blocks[0]['b1'].shape[1]
    Cout = blocks[-1]['b3'].shape[1]
    HW = H * W

    # direction-checked static roll amounts for the 9 conv taps (tap-major)
    np_sem = _roll_is_np_semantics()
    offs = [dy * W + dx for dy in (-1, 0, 1) for dx in (-1, 0, 1)]
    tap_shifts = tuple(((-s) % M) if np_sem else (s % M) for s in offs)

    mask = _conv3x3_row_masks(G, H, W, M, P)
    pm = _pool_matrix(G, HW, M)

    in_specs = [
        pl.BlockSpec((None, M, Cin), lambda i: (i, 0, 0)),       # x tile
        pl.BlockSpec((M, 9 * P), lambda i: (0, 0)),              # conv2 row masks
    ]
    args = [x_tiles, mask]
    has_proj = []
    # TODO(synk): at real channel counts (cin=2048, planes=512) single-buffer
    # the grid-invariant weights (pipeline_mode=pl.Buffered(1)) and re-derive
    # vmem_limit_bytes against v7x's 64 MiB (v5e scoped default is 16 MiB).
    for prm in blocks:
        cin_b = prm['w1'].shape[0]
        in_specs += [
            pl.BlockSpec((cin_b, P), lambda i: (0, 0)),          # w1
            pl.BlockSpec((1, P), lambda i: (0, 0)),              # b1
            pl.BlockSpec((9 * P, P), lambda i: (0, 0)),          # w2 (flat taps)
            pl.BlockSpec((1, P), lambda i: (0, 0)),              # b2
            pl.BlockSpec((P, Cout), lambda i: (0, 0)),           # w3
            pl.BlockSpec((1, Cout), lambda i: (0, 0)),           # b3
        ]
        args += [prm['w1'], prm['b1'], prm['w2'], prm['b2'], prm['w3'], prm['b3']]
        has_proj.append('wd' in prm)
        if has_proj[-1]:
            in_specs += [pl.BlockSpec((cin_b, Cout), lambda i: (0, 0)),
                         pl.BlockSpec((1, Cout), lambda i: (0, 0))]
            args += [prm['wd'], prm['bd']]
    in_specs += [pl.BlockSpec((G, M), lambda i: (0, 0))]         # pooling matrix
    args += [pm]

    kernel = partial(_res5_head_kernel,
                     num_blocks=len(blocks),
                     has_proj=tuple(has_proj),
                     tap_shifts=tap_shifts,
                     inv_hw=1.0 / HW)
    return pl.pallas_call(
        kernel,
        out_shape=jax.ShapeDtypeStruct((T, G, Cout), jnp.float32),
        grid=(T,),
        in_specs=in_specs,
        out_specs=pl.BlockSpec((None, G, Cout), lambda i: (i, 0, 0)),
        compiler_params=pltpu.CompilerParams(
            dimension_semantics=("parallel",),
            vmem_limit_bytes=32 * 1024 * 1024),
    )(*args)


# ---------------------------- JAX glue --------------------------------------
def roi_align(feat, rois, resolution, spatial_scale, sampling_ratio=2):
    """Detectron-style RoIAlign (aligned=False).  feat: [N,H,W,C] NHWC,
    rois: [R,5] = (batch_idx, x1, y1, x2, y2) in image coords."""
    N, H, W, C = feat.shape
    Rn = rois.shape[0]
    sr = sampling_ratio

    batch_idx = rois[:, 0].astype(jnp.int32)
    x1 = rois[:, 1] * spatial_scale
    y1 = rois[:, 2] * spatial_scale
    x2 = rois[:, 3] * spatial_scale
    y2 = rois[:, 4] * spatial_scale
    roi_w = jnp.maximum(x2 - x1, 1.0)
    roi_h = jnp.maximum(y2 - y1, 1.0)
    bin_w = roi_w / resolution
    bin_h = roi_h / resolution

    grid = (jnp.arange(resolution, dtype=jnp.float32)[:, None]
            + (jnp.arange(sr, dtype=jnp.float32)[None, :] + 0.5) / sr).reshape(-1)
    ys = y1[:, None] + grid[None, :] * bin_h[:, None]   # [R, res*sr]
    xs = x1[:, None] + grid[None, :] * bin_w[:, None]   # [R, res*sr]

    imgs = jnp.take(feat, batch_idx, axis=0)            # [R, H, W, C]

    def sample_one(img, ys_r, xs_r):
        vy = jnp.logical_and(ys_r >= -1.0, ys_r <= float(H))
        vx = jnp.logical_and(xs_r >= -1.0, xs_r <= float(W))
        ys_c = jnp.clip(ys_r, 0.0, H - 1.0)
        xs_c = jnp.clip(xs_r, 0.0, W - 1.0)
        y0 = jnp.floor(ys_c).astype(jnp.int32)
        x0 = jnp.floor(xs_c).astype(jnp.int32)
        y1i = jnp.minimum(y0 + 1, H - 1)
        x1i = jnp.minimum(x0 + 1, W - 1)
        ly = ys_c - y0.astype(jnp.float32)
        lx = xs_c - x0.astype(jnp.float32)
        row0 = img[y0]                       # [Py, W, C]
        row1 = img[y1i]
        Ia = row0[:, x0]                     # [Py, Px, C]
        Ib = row0[:, x1i]
        Ic = row1[:, x0]
        Id = row1[:, x1i]
        wy0 = (1.0 - ly)[:, None]
        wy1 = ly[:, None]
        wx0 = (1.0 - lx)[None, :]
        wx1 = lx[None, :]
        val = ((wy0 * wx0)[..., None] * Ia + (wy0 * wx1)[..., None] * Ib
               + (wy1 * wx0)[..., None] * Ic + (wy1 * wx1)[..., None] * Id)
        mask = (vy[:, None] & vx[None, :]).astype(val.dtype)[..., None]
        return val * mask

    sampled = jax.vmap(sample_one)(imgs, ys, xs)         # [R, res*sr, res*sr, C]
    sampled = sampled.reshape(Rn, resolution, sr, resolution, sr, C)
    return sampled.mean(axis=(2, 4))                     # [R, res, res, C]


def resnet_roi_conv5_head_forward(x_nchw, rpn_ret, params, spatial_scale=SPATIAL_SCALE):
    """Equivalent of ResNet_roi_conv5_head.forward (inference path)."""
    feat = jnp.transpose(x_nchw, (0, 2, 3, 1))           # NCHW -> NHWC
    rois = rpn_ret['rois']
    # TODO(synk): roi_align below is plain-XLA gathers; if profiling shows it
    # dominates, move it into a Pallas kernel with the boxes as scalar prefetch.
    xroi = roi_align(feat, rois, RESOLUTION, spatial_scale, SAMPLING_RATIO)
    R, H, W, Cin = xroi.shape
    HW = H * W

    T, G, M = _tile_plan(R, HW)
    x = xroi.reshape(R, HW, Cin)
    if T * G > R:                                        # pad ROI count
        x = jnp.concatenate(
            [x, jnp.zeros((T * G - R, HW, Cin), x.dtype)], axis=0)
    x = x.reshape(T, G * HW, Cin)
    if M > G * HW:                                       # pad rows to 8-aligned M
        x = jnp.concatenate(
            [x, jnp.zeros((T, M - G * HW, Cin), x.dtype)], axis=1)
    x = x.astype(jnp.bfloat16)

    pooled = res5_head_fused(x, params, G=G, H=H, W=W)   # [T, G, DIM_OUT] f32
    pooled = pooled.reshape(T * G, -1)[:R]
    return pooled.reshape(R, -1, 1, 1)                   # NCHW, like PyTorch


# ------------------------- parameter init -----------------------------------
def _init_affine(key, c):
    k1, k2 = jax.random.split(key)
    return (1.0 + 0.1 * jax.random.normal(k1, (c,), jnp.float32),
            0.1 * jax.random.normal(k2, (c,), jnp.float32))


def _init_block(key, cin, planes, downsample):
    keys = jax.random.split(key, 8)
    w1 = jax.random.normal(keys[0], (cin, planes), jnp.float32) / np.sqrt(cin)
    s1, b1 = _init_affine(keys[1], planes)
    w2 = jax.random.normal(keys[2], (9, planes, planes), jnp.float32) / np.sqrt(9.0 * planes)
    s2, b2 = _init_affine(keys[3], planes)
    w3 = jax.random.normal(keys[4], (planes, planes * EXPANSION), jnp.float32) / np.sqrt(planes)
    s3, b3 = _init_affine(keys[5], planes * EXPANSION)
    # Fold AffineChannel2d scale into the conv weights; cast weights to bf16.
    # w2 is stored pre-flattened to [9*planes, planes] so the kernel does a
    # single K=9P MXU contraction over the im2col taps.
    p = {
        'w1': (w1 * s1[None, :]).astype(jnp.bfloat16), 'b1': b1.reshape(1, -1),
        'w2': (w2 * s2[None, None, :]).reshape(9 * planes, planes).astype(jnp.bfloat16),
        'b2': b2.reshape(1, -1),
        'w3': (w3 * s3[None, :]).astype(jnp.bfloat16), 'b3': b3.reshape(1, -1),
    }
    if downsample:
        wd = jax.random.normal(keys[6], (cin, planes * EXPANSION), jnp.float32) / np.sqrt(cin)
        sd, bd = _init_affine(keys[7], planes * EXPANSION)
        p['wd'] = (wd * sd[None, :]).astype(jnp.bfloat16)
        p['bd'] = bd.reshape(1, -1)
    return p


def make_params(key, dim_in=DIM_IN, planes=PLANES):
    keys = jax.random.split(key, NUM_BLOCKS)
    blocks, cin = [], dim_in
    for i in range(NUM_BLOCKS):
        blocks.append(_init_block(keys[i], cin, planes,
                                  downsample=(cin != planes * EXPANSION)))
        cin = planes * EXPANSION
    return {'res5': blocks}


# ------------------------------- main ----------------------------------------
if __name__ == "__main__":
    key = jax.random.PRNGKey(0)
    k_feat, k_xy, k_wh, k_par = jax.random.split(key, 4)

    # backbone feature map (NCHW, like PyTorch)
    x = jax.random.normal(k_feat, (1, DIM_IN, 16, 16), jnp.float32)

    # deterministic rois: [batch_idx, x1, y1, x2, y2] in image coords
    R = 8
    xy1 = jax.random.uniform(k_xy, (R, 2), jnp.float32, minval=0.0, maxval=180.0)
    wh = jax.random.uniform(k_wh, (R, 2), jnp.float32, minval=30.0, maxval=70.0)
    rois = jnp.concatenate([jnp.zeros((R, 1), jnp.float32), xy1, xy1 + wh], axis=1)
    rpn_ret = {'rois': rois}

    params = make_params(k_par)

    _roll_is_np_semantics()     # warm the one-time direction self-check eagerly

    fwd = jax.jit(resnet_roi_conv5_head_forward)
    out = jax.block_until_ready(fwd(x, rpn_ret, params))

    assert out.shape == (R, DIM_OUT, 1, 1), out.shape
    assert bool(jnp.all(jnp.isfinite(out)))
    print("KERNEL_OK")
</pallas_src>

<mosaic_0001>
module attributes {stable_mosaic.version = 11 : i64} {
  func.func @k(%arg0: memref<8x128xf32, #tpu.memory_space<vmem>>, %arg1: memref<8x128xf32, #tpu.memory_space<vmem>>) attributes {dimension_semantics = [], scalar_prefetch = 0 : i64, scratch_operands = 0 : i64, tpu.core_type = #tpu.core_type<tc>} {
    %c0 = arith.constant 0 : index
    %c0_0 = arith.constant 0 : index
    %0 = vector.load %arg0[%c0, %c0_0] : memref<8x128xf32, #tpu.memory_space<vmem>>, vector<8x128xf32>
    %c3_i32 = arith.constant 3 : i32
    %1 = tpu.dynamic_rotate %0 by %c3_i32 dim 0 : vector<8x128xf32>, i32 -> vector<8x128xf32>
    %c0_1 = arith.constant 0 : index
    %c0_2 = arith.constant 0 : index
    %2 = vector.load %arg1[%c0_1, %c0_2] : memref<8x128xf32, #tpu.memory_space<vmem>>, vector<8x128xf32>
    tpu.vector_store %arg1[%c0_1, %c0_2], %1 {strides = array<i32>} : memref<8x128xf32, #tpu.memory_space<vmem>>, vector<8x128xf32>,
    return
  }
}

</mosaic_0001>

<llo_original>
// kernel: tpu_custom_call.1
$region0: #{tpu_custom_call.1}
  #allocation0 [shape = 'u32[]', space=smem, size = 0x4, offset = 0x4, fixed_abs, tag = 'smem constant byte address 0x4 - core index']
  #allocation1 [shape = 'u32[144,128]{1,0:T(1,128)}', space=vmem, size = 0x12000, scoped, tag = 'internal scratch']
  %s0 = inlined_call_operand.hbm [shape: f32[8,128], index: 0, kind: input, shape index: {}]
  %s1 = inlined_call_operand.hbm [shape: f32[8,128], index: 1, kind: output, shape index: {}]
  %s2 = sld [smem:[#allocation0]]
  $region18: #{tpu_custom_call.1} parent=0
    _
  %s4 = ssub.s32 1, %s2
  %s5 = scalar_select 0, %s4, %s2
  $region1: #{tpu_custom_call.1} parent=0
    #allocation2 [shape = 'u8[4096]{0}', space=vmem, size = 0x1000, scoped, tag = 'input window, operand 0, single buffered']
    #allocation3 [shape = 's32[1]{0}', space=sflag, size = 0x4, scoped, tag = 'scoped memory for tpu_custom_call.1']
    #allocation4 [shape = 's32[1]{0}', space=sflag, size = 0x4, scoped, tag = 'scoped memory for tpu_custom_call.1']
    #allocation5 [shape = 'u8[4096]{0}', space=vmem, size = 0x1000, scoped, tag = 'output window, operand 0, single buffered']
    %6 = vsyncpa [#allocation3], 0
    %7 = vsyncpa [#allocation4], 0
    // Predicated region
    $region2: #{tpu_custom_call.1} parent=1 // pred_check
      _
    $region3: #{tpu_custom_call.1} parent=1 // pred_check_branch
      %9 = sbr.rel (0) target = $region5
    $region4: #{tpu_custom_call.1} parent=1 // pred_region
      %s11 = ssub.s32 128, 128
      %12 = vsyncadd [#allocation3], %s11
      %s14 = sshll.u32 [#allocation2], 4
      %s15 = int_to_ptr.vmem [resolvable:$true] %s14
      %17 = dma.hbm_to_vmem [thread:$0]  %s0, 128, %s15, [#allocation3]
    $region5: #{tpu_custom_call.1} parent=1 // pred_fallthru
      _
    // Predicated region
    $region6: #{tpu_custom_call.1} parent=1 // pred_check
      _
    $region7: #{tpu_custom_call.1} parent=1 // pred_check_branch
      %19 = sbr.rel (0) target = $region9
    $region8: #{tpu_custom_call.1} parent=1 // pred_region
      %20 = dma.done [#allocation3], 128
    $region9: #{tpu_custom_call.1} parent=1 // pred_fallthru
      _
    %v21 = vld [vmem:[#allocation2] sm:$0xff]
    %v22 = vrot.slane %v21, 5
    %23 = vst [vmem:[#allocation5] sm:$0xff] %v22
    // Predicated region
    $region10: #{tpu_custom_call.1} parent=1 // pred_check
      _
    $region11: #{tpu_custom_call.1} parent=1 // pred_check_branch
      %25 = sbr.rel (0) target = $region13
    $region12: #{tpu_custom_call.1} parent=1 // pred_region
      %s27 = ssub.s32 128, 128
      %28 = vsyncadd [#allocation4], %s27
      %s30 = sshll.u32 [#allocation5], 4
      %s31 = int_to_ptr.vmem [resolvable:$true] %s30
      %33 = dma.vmem_to_hbm [thread:$0]  %s31, 128, %s1, [#allocation4]
    $region13: #{tpu_custom_call.1} parent=1 // pred_fallthru
      _
    // Predicated region
    $region14: #{tpu_custom_call.1} parent=1 // pred_check
      _
    $region15: #{tpu_custom_call.1} parent=1 // pred_check_branch
      %35 = sbr.rel (0) target = $region17
    $region16: #{tpu_custom_call.1} parent=1 // pred_region
      %36 = dma.done [#allocation4], 128
    $region17: #{tpu_custom_call.1} parent=1 // pred_fallthru
      _
    %37 = vsyncpa [#allocation3], 1
    %38 = vsyncpa [#allocation4], 1

</llo_original>
